<compile_context>
chip_gen: v6e
topology: v6e:2x2x1
jax: 0.10.0
libtpu: 0.0.40
codegen_flags: <defaults>
</compile_context>

<pallas_src>
import functools

import jax
import jax.numpy as jnp
from jax import lax
from jax.experimental import pallas as pl
from jax.experimental.pallas import tpu as pltpu


def _cdiv(a, b):
    return -(-a // b)


def _cnn_kernel(ids_ref, tw_ref, bc_ref, wfc_ref, bfc_ref, o_ref, *,
                kh, s_out, stride, bt, v_pad, c_pad):
    # ids_ref: (Bt, S_pad, 1) int32  padded token ids (pad positions -> zero-row id)
    # tw_ref:  (kh, V_pad, C_pad)    bf16  folded weight: tw[j, v, :] = emb[v] @ W_j
    # bc_ref:  (1, C_pad)            f32   conv bias (zero-padded channels)
    # wfc_ref: (C_pad, O_pad)        bf16  fc weight (transposed, zero-padded)
    # bfc_ref: (1, O_pad)            f32   fc bias (zero-padded)
    # o_ref:   (Bt, O_pad)           f32   lane-dense output slab
    rout = bt * s_out
    span = (s_out - 1) * stride + 1

    ids = ids_ref[...]                                            # (Bt, S_pad, 1)
    iota_v = lax.broadcasted_iota(jnp.int32, (rout, v_pad), 1)    # vocab lane iota

    # conv[b, t, c] = sum_j emb_pad[b, t*stride + j] @ W_j[:, c] + bias[c]
    # Each term is a one-hot row-gather of tw[j] done as a single MXU matmul
    # (K = V_pad = 128); embedding lookup and conv row j are fused.
    # TODO(synk): one-hot gather assumes a small vocab (V_pad=128 here); a manual
    # DMA row-gather path would be needed for large vocabularies.
    conv = None
    for j in range(kh):
        idj = ids[:, j:j + span:stride, :].reshape(rout, 1)       # (Bt*S_out, 1) int32
        onehot = jnp.where(iota_v == idj, 1.0, 0.0).astype(jnp.bfloat16)
        yj = jnp.dot(onehot, tw_ref[j], preferred_element_type=jnp.float32)
        conv = yj if conv is None else conv + yj                  # (Bt*S_out, C_pad) f32

    conv = conv + bc_ref[...]                                     # conv bias, f32
    act = jnp.maximum(conv, 0.0)                                  # ReLU
    pooled = jnp.max(act.reshape(bt, s_out, c_pad), axis=1)       # (Bt, C_pad) max over time
    # TODO(synk): nn.Dropout(0.3) is identity in eval mode; training dropout omitted.
    out = jnp.dot(pooled.astype(wfc_ref.dtype), wfc_ref[...],
                  preferred_element_type=jnp.float32) + bfc_ref[...]   # (Bt, O_pad)
    o_ref[...] = out                                              # lane-dense store


def cnn_forward(x_ids, emb_table, conv_w, conv_b, fc_w, fc_b, *,
                kernel_heights, stride, padding, batch_tile=256):
    """x_ids: (B, S) int32.  Returns (B, output_size) float32."""
    B, S = x_ids.shape
    vocab_size, emb_size = emb_table.shape
    out_channels = conv_w.shape[0]
    output_size = fc_w.shape[0]

    S_pad = S + 2 * padding
    S_out = (S_pad - kernel_heights) // stride + 1
    assert S_out >= 1

    LANE = 128
    V_pad = _cdiv(vocab_size + 1, LANE) * LANE     # +1: extra all-zero row for pad tokens
    C_pad = _cdiv(out_channels, LANE) * LANE
    O_pad = _cdiv(output_size, LANE) * LANE

    # ---- batch tiling: big 8-aligned tiles, >= 2 grid steps when possible ------
    assert batch_tile % 8 == 0 and batch_tile >= 8
    # Cap the tile so per-step VMEM (ids tile x2 buffers + one-hot + conv/act f32
    # intermediates) stays well under the scoped limit (v7x: 64 MiB physical VMEM).
    ids_tile_bytes = 2 * (_cdiv(S_pad, 8) * 8) * 128 * 4
    per_sample = (ids_tile_bytes
                  + S_out * V_pad * 6                  # one-hot f32 + bf16
                  + 2 * S_out * C_pad * 4              # conv + act (f32)
                  + 2 * (C_pad + O_pad) * 4)
    vmem_budget = 20 * 1024 * 1024
    batch_tile = min(batch_tile, max(8, (vmem_budget // max(per_sample, 1)) // 8 * 8))

    if B <= 8:
        Bt = B                                         # single tiny block (grid of 1)
    else:
        # >= 2 (even) grid steps so the "parallel" axis shards across both v7x TCs.
        n_tiles = max(2, _cdiv(B, batch_tile))
        if n_tiles % 2:
            n_tiles += 1
        Bt = max(8, min(batch_tile, _cdiv(_cdiv(B, n_tiles), 8) * 8))
    B_pad = _cdiv(B, Bt) * Bt

    # ---- weight folding / lane padding (tiny XLA ops; no (B,S,E) HBM traffic) --
    pad_id = vocab_size                                # index of appended zero row
    table_p = jnp.zeros((V_pad, emb_size), jnp.float32)
    table_p = table_p.at[:vocab_size, :].set(emb_table.astype(jnp.float32))

    # tw[j, v, c] = emb_table[v, :] . conv_w[c, 0, j, :]   (embedding folded into conv)
    w = conv_w.reshape(out_channels, kernel_heights, emb_size).astype(jnp.float32)
    tw = jnp.einsum('ve,cje->jvc', table_p, w)                     # (kh, V_pad, C) f32
    tw = jnp.pad(tw, ((0, 0), (0, 0), (0, C_pad - out_channels)))
    tw = tw.astype(jnp.bfloat16)                                   # (kh, V_pad, C_pad)

    bc = jnp.pad(conv_b.astype(jnp.float32),
                 (0, C_pad - out_channels)).reshape(1, C_pad)
    wfc = jnp.zeros((C_pad, O_pad), jnp.float32)
    wfc = wfc.at[:out_channels, :output_size].set(fc_w.T.astype(jnp.float32))
    wfc = wfc.astype(jnp.bfloat16)
    bfc = jnp.pad(fc_b.astype(jnp.float32),
                  (0, O_pad - output_size)).reshape(1, O_pad)

    # Token ids, zero-padded in time (conv padding) and batch (tile alignment) with
    # the sentinel id whose embedding row is all zeros -> exact Conv2d zero padding.
    ids_p = jnp.pad(x_ids.astype(jnp.int32),
                    ((0, B_pad - B), (padding, padding)),
                    constant_values=pad_id)[..., None]             # (B_pad, S_pad, 1)

    kernel = functools.partial(
        _cnn_kernel, kh=kernel_heights, s_out=S_out, stride=stride,
        bt=Bt, v_pad=V_pad, c_pad=C_pad)

    out = pl.pallas_call(
        kernel,
        out_shape=jax.ShapeDtypeStruct((B_pad, O_pad), jnp.float32),
        grid_spec=pltpu.PrefetchScalarGridSpec(
            num_scalar_prefetch=0,
            grid=(B_pad // Bt,),
            in_specs=[
                pl.BlockSpec((Bt, S_pad, 1), lambda b: (b, 0, 0)),
                pl.BlockSpec((kernel_heights, V_pad, C_pad), lambda b: (0, 0, 0)),
                pl.BlockSpec((1, C_pad), lambda b: (0, 0)),
                pl.BlockSpec((C_pad, O_pad), lambda b: (0, 0)),
                pl.BlockSpec((1, O_pad), lambda b: (0, 0)),
            ],
            out_specs=pl.BlockSpec((Bt, O_pad), lambda b: (b, 0)),
        ),
        compiler_params=pltpu.CompilerParams(
            dimension_semantics=("parallel",),
            vmem_limit_bytes=48 * 1024 * 1024),
    )(ids_p, tw, bc, wfc, bfc)

    return out[:B, :output_size]


if __name__ == "__main__":
    # Module hyper-parameters (small, consistent with the forward pass)
    vocab_size = 100
    emb_size = 32
    padding_idx = 0
    output_size = 4
    out_channels = 16
    kernel_heights = 3
    stride = 1
    padding = 1

    batch = 2
    seq = 8

    key = jax.random.PRNGKey(0)
    k_emb, k_cw, k_cb, k_fw, k_fb, k_x = jax.random.split(key, 6)

    # Deterministic synthetic parameters (no checkpoint load)
    emb_table = jax.random.normal(k_emb, (vocab_size, emb_size), jnp.float32) * 0.1
    emb_table = emb_table.at[padding_idx].set(0.0)            # padding_idx row is zero
    conv_w = jax.random.normal(k_cw, (out_channels, 1, kernel_heights, emb_size),
                               jnp.float32) * 0.1
    conv_b = jax.random.normal(k_cb, (out_channels,), jnp.float32) * 0.1
    fc_w = jax.random.normal(k_fw, (output_size, out_channels), jnp.float32) * 0.1
    fc_b = jax.random.normal(k_fb, (output_size,), jnp.float32) * 0.1

    # Example token-id input
    x_ids = jax.random.randint(k_x, (batch, seq), 0, vocab_size, dtype=jnp.int32)

    out = cnn_forward(x_ids, emb_table, conv_w, conv_b, fc_w, fc_b,
                      kernel_heights=kernel_heights, stride=stride, padding=padding)
    out = jax.block_until_ready(out)
    assert out.shape == (batch, output_size)

    # Pure-JAX f32 reference (kernel uses bf16 matmul operands -> tolerance check).
    emb = jnp.take(emb_table, x_ids, axis=0)                           # (B, S, E)
    emb_p = jnp.pad(emb, ((0, 0), (padding, padding), (0, 0)))
    w_ref = conv_w.reshape(out_channels, kernel_heights, emb_size)
    s_out = (seq + 2 * padding - kernel_heights) // stride + 1
    conv_ref = jnp.stack(
        [jnp.einsum('bje,cje->bc',
                    emb_p[:, t * stride:t * stride + kernel_heights, :], w_ref)
         for t in range(s_out)], axis=1) + conv_b                      # (B, S_out, C)
    ref = jnp.max(jnp.maximum(conv_ref, 0.0), axis=1) @ fc_w.T + fc_b  # (B, O)
    assert float(jnp.max(jnp.abs(out - ref))) < 5e-2

    print("KERNEL_OK")
</pallas_src>

<mosaic_0001>
module attributes {stable_mosaic.version = 11 : i64} {
  func.func @_cnn_kernel(%arg0: i32, %arg1: memref<2x10x1xi32, #tpu.memory_space<vmem>>, %arg2: memref<3x128x128xbf16, #tpu.memory_space<vmem>>, %arg3: memref<1x128xf32, #tpu.memory_space<vmem>>, %arg4: memref<128x128xbf16, #tpu.memory_space<vmem>>, %arg5: memref<1x128xf32, #tpu.memory_space<vmem>>, %arg6: memref<2x128xf32, #tpu.memory_space<vmem>>) attributes {dimension_semantics = [#tpu.dimension_semantics<parallel>], iteration_bounds = array<i64: 1>, scalar_prefetch = 0 : i64, scratch_operands = 0 : i64, tpu.core_type = #tpu.core_type<tc>, window_params = [{transform_indices = @transform_0, window_bounds = array<i64: 2, 10, 1>}, {pipeline_mode = #tpu.pipeline_mode<synchronous>, transform_indices = @transform_1, window_bounds = array<i64: 3, 128, 128>}, {pipeline_mode = #tpu.pipeline_mode<synchronous>, transform_indices = @transform_2, window_bounds = array<i64: 1, 128>}, {pipeline_mode = #tpu.pipeline_mode<synchronous>, transform_indices = @transform_3, window_bounds = array<i64: 128, 128>}, {pipeline_mode = #tpu.pipeline_mode<synchronous>, transform_indices = @transform_4, window_bounds = array<i64: 1, 128>}, {transform_indices = @transform_5, window_bounds = array<i64: 2, 128>}]} {
    %c0 = arith.constant 0 : index
    %c0_0 = arith.constant 0 : index
    %c0_1 = arith.constant 0 : index
    %0 = vector.load %arg1[%c0, %c0_0, %c0_1] : memref<2x10x1xi32, #tpu.memory_space<vmem>>, vector<2x10x1xi32>
    %1 = tpu.iota {dimensions = array<i32: 1>} : vector<16x128xi32>
    %2 = vector.extract_strided_slice %0 {offsets = [0, 0, 0], sizes = [2, 8, 1], strides = [1, 1, 1]} : vector<2x10x1xi32> to vector<2x8x1xi32>
    %3 = vector.shape_cast %2 : vector<2x8x1xi32> to vector<16x1xi32>
    %4 = vector.broadcast %3 : vector<16x1xi32> to vector<16x128xi32>
    %5 = arith.cmpi eq, %1, %4 : vector<16x128xi32>
    %cst = arith.constant 1.000000e+00 : f32
    %cst_2 = arith.constant 0.000000e+00 : f32
    %6 = vector.broadcast %cst : f32 to vector<16x128xf32>
    %7 = vector.broadcast %cst_2 : f32 to vector<16x128xf32>
    %8 = arith.select %5, %6, %7 : vector<16x128xi1>, vector<16x128xf32>
    %9 = arith.truncf %8 : vector<16x128xf32> to vector<16x128xbf16>
    %c0_3 = arith.constant 0 : index
    %c0_4 = arith.constant 0 : index
    %c0_5 = arith.constant 0 : index
    %10 = vector.load %arg2[%c0_3, %c0_4, %c0_5] : memref<3x128x128xbf16, #tpu.memory_space<vmem>>, vector<1x128x128xbf16>
    %11 = vector.shape_cast %10 : vector<1x128x128xbf16> to vector<128x128xbf16>
    %cst_6 = arith.constant dense<0.000000e+00> : vector<16x128xf32>
    %12 = tpu.matmul %9, %11, %cst_6 {dimension_numbers = #tpu.dot_dimension_numbers<[1], [0], [0], [1], [0, 0, 1, 1], [], []>} : vector<16x128xbf16>, vector<128x128xbf16>, vector<16x128xf32> -> vector<16x128xf32>
    %13 = vector.extract_strided_slice %0 {offsets = [0, 1, 0], sizes = [2, 8, 1], strides = [1, 1, 1]} : vector<2x10x1xi32> to vector<2x8x1xi32>
    %14 = vector.shape_cast %13 : vector<2x8x1xi32> to vector<16x1xi32>
    %15 = vector.broadcast %14 : vector<16x1xi32> to vector<16x128xi32>
    %16 = arith.cmpi eq, %1, %15 : vector<16x128xi32>
    %cst_7 = arith.constant 1.000000e+00 : f32
    %cst_8 = arith.constant 0.000000e+00 : f32
    %17 = vector.broadcast %cst_7 : f32 to vector<16x128xf32>
    %18 = vector.broadcast %cst_8 : f32 to vector<16x128xf32>
    %19 = arith.select %16, %17, %18 : vector<16x128xi1>, vector<16x128xf32>
    %20 = arith.truncf %19 : vector<16x128xf32> to vector<16x128xbf16>
    %c1 = arith.constant 1 : index
    %c0_9 = arith.constant 0 : index
    %c0_10 = arith.constant 0 : index
    %21 = vector.load %arg2[%c1, %c0_9, %c0_10] : memref<3x128x128xbf16, #tpu.memory_space<vmem>>, vector<1x128x128xbf16>
    %22 = vector.shape_cast %21 : vector<1x128x128xbf16> to vector<128x128xbf16>
    %cst_11 = arith.constant dense<0.000000e+00> : vector<16x128xf32>
    %23 = tpu.matmul %20, %22, %cst_11 {dimension_numbers = #tpu.dot_dimension_numbers<[1], [0], [0], [1], [0, 0, 1, 1], [], []>} : vector<16x128xbf16>, vector<128x128xbf16>, vector<16x128xf32> -> vector<16x128xf32>
    %24 = arith.addf %12, %23 : vector<16x128xf32>
    %25 = vector.extract_strided_slice %0 {offsets = [0, 2, 0], sizes = [2, 8, 1], strides = [1, 1, 1]} : vector<2x10x1xi32> to vector<2x8x1xi32>
    %26 = vector.shape_cast %25 : vector<2x8x1xi32> to vector<16x1xi32>
    %27 = vector.broadcast %26 : vector<16x1xi32> to vector<16x128xi32>
    %28 = arith.cmpi eq, %1, %27 : vector<16x128xi32>
    %cst_12 = arith.constant 1.000000e+00 : f32
    %cst_13 = arith.constant 0.000000e+00 : f32
    %29 = vector.broadcast %cst_12 : f32 to vector<16x128xf32>
    %30 = vector.broadcast %cst_13 : f32 to vector<16x128xf32>
    %31 = arith.select %28, %29, %30 : vector<16x128xi1>, vector<16x128xf32>
    %32 = arith.truncf %31 : vector<16x128xf32> to vector<16x128xbf16>
    %c2 = arith.constant 2 : index
    %c0_14 = arith.constant 0 : index
    %c0_15 = arith.constant 0 : index
    %33 = vector.load %arg2[%c2, %c0_14, %c0_15] : memref<3x128x128xbf16, #tpu.memory_space<vmem>>, vector<1x128x128xbf16>
    %34 = vector.shape_cast %33 : vector<1x128x128xbf16> to vector<128x128xbf16>
    %cst_16 = arith.constant dense<0.000000e+00> : vector<16x128xf32>
    %35 = tpu.matmul %32, %34, %cst_16 {dimension_numbers = #tpu.dot_dimension_numbers<[1], [0], [0], [1], [0, 0, 1, 1], [], []>} : vector<16x128xbf16>, vector<128x128xbf16>, vector<16x128xf32> -> vector<16x128xf32>
    %36 = arith.addf %24, %35 : vector<16x128xf32>
    %c0_17 = arith.constant 0 : index
    %c0_18 = arith.constant 0 : index
    %37 = vector.load %arg3[%c0_17, %c0_18] : memref<1x128xf32, #tpu.memory_space<vmem>>, vector<1x128xf32>
    %38 = vector.broadcast %37 : vector<1x128xf32> to vector<16x128xf32>
    %39 = arith.addf %36, %38 : vector<16x128xf32>
    %cst_19 = arith.constant 0.000000e+00 : f32
    %40 = vector.broadcast %cst_19 : f32 to vector<16x128xf32>
    %41 = arith.maximumf %39, %40 : vector<16x128xf32>
    %42 = vector.shape_cast %41 : vector<16x128xf32> to vector<2x8x128xf32>
    %cst_20 = arith.constant dense<0xFF800000> : vector<2x128xf32>
    %43 = vector.multi_reduction <maximumf>, %42, %cst_20 [1] : vector<2x8x128xf32> to vector<2x128xf32>
    %44 = arith.truncf %43 : vector<2x128xf32> to vector<2x128xbf16>
    %c0_21 = arith.constant 0 : index
    %c0_22 = arith.constant 0 : index
    %45 = vector.load %arg4[%c0_21, %c0_22] : memref<128x128xbf16, #tpu.memory_space<vmem>>, vector<128x128xbf16>
    %cst_23 = arith.constant dense<0.000000e+00> : vector<2x128xf32>
    %46 = tpu.matmul %44, %45, %cst_23 {dimension_numbers = #tpu.dot_dimension_numbers<[1], [0], [0], [1], [0, 0, 1, 1], [], []>} : vector<2x128xbf16>, vector<128x128xbf16>, vector<2x128xf32> -> vector<2x128xf32>
    %c0_24 = arith.constant 0 : index
    %c0_25 = arith.constant 0 : index
    %47 = vector.load %arg5[%c0_24, %c0_25] : memref<1x128xf32, #tpu.memory_space<vmem>>, vector<1x128xf32>
    %48 = vector.broadcast %47 : vector<1x128xf32> to vector<2x128xf32>
    %49 = arith.addf %46, %48 : vector<2x128xf32>
    %c0_26 = arith.constant 0 : index
    %c0_27 = arith.constant 0 : index
    %50 = vector.load %arg6[%c0_26, %c0_27] : memref<2x128xf32, #tpu.memory_space<vmem>>, vector<2x128xf32>
    tpu.vector_store %arg6[%c0_26, %c0_27], %49 {strides = array<i32>} : memref<2x128xf32, #tpu.memory_space<vmem>>, vector<2x128xf32>,
    return
  }
  func.func @transform_0(%arg0: i32) -> (i32, i32, i32) {
    %c0_i32 = arith.constant 0 : i32
    %c0_i32_0 = arith.constant 0 : i32
    %c0_i32_1 = arith.constant 0 : i32
    return %arg0, %c0_i32, %c0_i32_0 : i32, i32, i32
  }
  func.func @transform_1(%arg0: i32) -> (i32, i32, i32) {
    %c0_i32 = arith.constant 0 : i32
    %c0_i32_0 = arith.constant 0 : i32
    %c0_i32_1 = arith.constant 0 : i32
    %c0_i32_2 = arith.constant 0 : i32
    return %c0_i32, %c0_i32_0, %c0_i32_1 : i32, i32, i32
  }
  func.func @transform_2(%arg0: i32) -> (i32, i32) {
    %c0_i32 = arith.constant 0 : i32
    %c0_i32_0 = arith.constant 0 : i32
    %c0_i32_1 = arith.constant 0 : i32
    return %c0_i32, %c0_i32_0 : i32, i32
  }
  func.func @transform_3(%arg0: i32) -> (i32, i32) {
    %c0_i32 = arith.constant 0 : i32
    %c0_i32_0 = arith.constant 0 : i32
    %c0_i32_1 = arith.constant 0 : i32
    return %c0_i32, %c0_i32_0 : i32, i32
  }
  func.func @transform_4(%arg0: i32) -> (i32, i32) {
    %c0_i32 = arith.constant 0 : i32
    %c0_i32_0 = arith.constant 0 : i32
    %c0_i32_1 = arith.constant 0 : i32
    return %c0_i32, %c0_i32_0 : i32, i32
  }
  func.func @transform_5(%arg0: i32) -> (i32, i32) {
    %c0_i32 = arith.constant 0 : i32
    %c0_i32_0 = arith.constant 0 : i32
    return %arg0, %c0_i32 : i32, i32
  }
}

</mosaic_0001>

<llo_original>
// kernel: tpu_custom_call.1
$region0: #{tpu_custom_call.1}
  #allocation0 [shape = 'u32[]', space=smem, size = 0x4, offset = 0x4, fixed_abs, tag = 'smem constant byte address 0x4 - core index']
  #allocation1 [shape = 'u32[144,128]{1,0:T(1,128)}', space=vmem, size = 0x12000, scoped, tag = 'internal scratch']
  %s0 = inlined_call_operand.vmem [shape: s32[2,10,1], index: 0, kind: input, shape index: {}]
  %s1 = inlined_call_operand.hbm [shape: bf16[3,128,128], index: 1, kind: input, shape index: {}]
  %s2 = inlined_call_operand.vmem [shape: f32[1,128], index: 2, kind: input, shape index: {}]
  %s3 = inlined_call_operand.hbm [shape: bf16[128,128], index: 3, kind: input, shape index: {}]
  %s4 = inlined_call_operand.vmem [shape: f32[1,128], index: 4, kind: input, shape index: {}]
  %s5 = inlined_call_operand.hbm [shape: f32[2,128], index: 5, kind: output, shape index: {}]
  %s6 = sld [smem:[#allocation0]]
  $region38: #{tpu_custom_call.1} parent=0
    _
  %s8 = ssub.s32 1, %s6
  %s9 = scalar_select 0, %s8, %s6
  $region1: #{tpu_custom_call.1} parent=0
    #allocation2 [shape = 'u8[98304]{0}', space=vmem, size = 0x18000, scoped, tag = 'input window, operand 1, single buffered']
    #allocation3 [shape = 's32[1]{0}', space=sflag, size = 0x4, scoped, tag = 'scoped memory for tpu_custom_call.1']
    #allocation4 [shape = 's32[1]{0}', space=sflag, size = 0x4, scoped, tag = 'scoped memory for tpu_custom_call.1']
    #allocation5 [shape = 'u8[32768]{0}', space=vmem, size = 0x8000, scoped, tag = 'input window, operand 3, single buffered']
    #allocation6 [shape = 's32[1]{0}', space=sflag, size = 0x4, scoped, tag = 'scoped memory for tpu_custom_call.1']
    #allocation7 [shape = 'u8[1024]{0}', space=vmem, size = 0x400, scoped, tag = 'output window, operand 0, single buffered']
    %10 = vsyncpa [#allocation3], 0
    %11 = vsyncpa [#allocation6], 0
    %12 = vsyncpa [#allocation4], 0
    // Predicated region
    $region2: #{tpu_custom_call.1} parent=1 // pred_check
      _
    $region3: #{tpu_custom_call.1} parent=1 // pred_check_branch
      %14 = sbr.rel (0) target = $region5
    $region4: #{tpu_custom_call.1} parent=1 // pred_region
      _
    $region5: #{tpu_custom_call.1} parent=1 // pred_fallthru
      _
    // Predicated region
    $region6: #{tpu_custom_call.1} parent=1 // pred_check
      _
    $region7: #{tpu_custom_call.1} parent=1 // pred_check_branch
      %16 = sbr.rel (0) target = $region9
    $region8: #{tpu_custom_call.1} parent=1 // pred_region
      %s18 = ssub.s32 3072, 3072
      %19 = vsyncadd [#allocation3], %s18
      %s20 = sshll.u32 [#allocation2], 4
      %s21 = int_to_ptr.vmem [resolvable:$true] %s20
      %26 = dma.hbm_to_vmem [thread:$0]  %s1, 3072, %s21, [#allocation3], 64, 64, 4
    $region9: #{tpu_custom_call.1} parent=1 // pred_fallthru
      _
    // Predicated region
    $region10: #{tpu_custom_call.1} parent=1 // pred_check
      _
    $region11: #{tpu_custom_call.1} parent=1 // pred_check_branch
      %28 = sbr.rel (0) target = $region13
    $region12: #{tpu_custom_call.1} parent=1 // pred_region
      _
    $region13: #{tpu_custom_call.1} parent=1 // pred_fallthru
      _
    // Predicated region
    $region14: #{tpu_custom_call.1} parent=1 // pred_check
      _
    $region15: #{tpu_custom_call.1} parent=1 // pred_check_branch
      %30 = sbr.rel (0) target = $region17
    $region16: #{tpu_custom_call.1} parent=1 // pred_region
      %s32 = ssub.s32 1024, 1024
      %33 = vsyncadd [#allocation6], %s32
      %s34 = sshll.u32 [#allocation5], 4
      %s35 = int_to_ptr.vmem [resolvable:$true] %s34
      %40 = dma.hbm_to_vmem [thread:$0]  %s3, 1024, %s35, [#allocation6], 64, 64, 4
    $region17: #{tpu_custom_call.1} parent=1 // pred_fallthru
      _
    // Predicated region
    $region18: #{tpu_custom_call.1} parent=1 // pred_check
      _
    $region19: #{tpu_custom_call.1} parent=1 // pred_check_branch
      %42 = sbr.rel (0) target = $region21
    $region20: #{tpu_custom_call.1} parent=1 // pred_region
      _
    $region21: #{tpu_custom_call.1} parent=1 // pred_fallthru
      _
    // Predicated region
    $region22: #{tpu_custom_call.1} parent=1 // pred_check
      _
    $region23: #{tpu_custom_call.1} parent=1 // pred_check_branch
      %44 = sbr.rel (0) target = $region25
    $region24: #{tpu_custom_call.1} parent=1 // pred_region
      %45 = dma.done [#allocation3], 3072
    $region25: #{tpu_custom_call.1} parent=1 // pred_fallthru
      _
    // Predicated region
    $region26: #{tpu_custom_call.1} parent=1 // pred_check
      _
    $region27: #{tpu_custom_call.1} parent=1 // pred_check_branch
      %47 = sbr.rel (0) target = $region29
    $region28: #{tpu_custom_call.1} parent=1 // pred_region
      %48 = dma.done [#allocation6], 1024
    $region29: #{tpu_custom_call.1} parent=1 // pred_fallthru
      _
    %v50 = vld [vmem:[%s0] sm:$0xff]
    %v51 = vld [vmem:[%s0 + $0x8] sm:$0x3]
    %v52 = vld [vmem:[%s0 + $0x10] sm:$0xff]
    %v53 = vld [vmem:[%s0 + $0x18] sm:$0x3]
    %v54 = vlaneseq
    %v55 = vand.u32 %v54, 127
    %56 = vset.pattern.permute.xlu0 0
    %57 = vperm.xlu0 %56, %v50
    %v58 = vpop.permute.xlu0 %57
    %59 = vset.pattern.permute.xlu0 0
    %60 = vperm.xlu0 %59, %v52
    %v61 = vpop.permute.xlu0 %60
    %vm62 = vcmp.eq.s32.totalorder %v55, %v58
    %vm63 = vcmp.eq.s32.totalorder %v55, %v61
    %v64 = vsel %vm62, 1.0, 0.0
    %v65 = vsel %vm63, 1.0, 0.0
    %v66 = vpack.c.bf16 %v65, %v64
    %v67 = vld [vmem:[#allocation2] sm:$0xf]
    %v68 = vld [vmem:[#allocation2 + $0x4] sm:$0xf]
    %v69 = vld [vmem:[#allocation2 + $0x8] sm:$0xf]
    %v70 = vld [vmem:[#allocation2 + $0xc] sm:$0xf]
    %v71 = vld [vmem:[#allocation2 + $0x10] sm:$0xf]
    %v72 = vld [vmem:[#allocation2 + $0x14] sm:$0xf]
    %v73 = vld [vmem:[#allocation2 + $0x18] sm:$0xf]
    %v74 = vld [vmem:[#allocation2 + $0x1c] sm:$0xf]
    %v75 = vld [vmem:[#allocation2 + $0x20] sm:$0xf]
    %v76 = vld [vmem:[#allocation2 + $0x24] sm:$0xf]
    %v77 = vld [vmem:[#allocation2 + $0x28] sm:$0xf]
    %v78 = vld [vmem:[#allocation2 + $0x2c] sm:$0xf]
    %v79 = vld [vmem:[#allocation2 + $0x30] sm:$0xf]
    %v80 = vld [vmem:[#allocation2 + $0x34] sm:$0xf]
    %v81 = vld [vmem:[#allocation2 + $0x38] sm:$0xf]
    %v82 = vld [vmem:[#allocation2 + $0x3c] sm:$0xf]
    %vm83 = vcmask 1046528
    %v84 = vrot.slane %v50, 1
    %v85 = vrot.slane %v51, 1
    %v86 = vsel %vm83, %v84, %v85
    %v87 = vrot.slane %v52, 1
    %v88 = vrot.slane %v53, 1
    %v89 = vsel %vm83, %v87, %v88
    %90 = vset.pattern.permute.xlu0 0
    %91 = vperm.xlu0 %90, %v86
    %v92 = vpop.permute.xlu0 %91
    %93 = vset.pattern.permute.xlu0 0
    %94 = vperm.xlu0 %93, %v89
    %v95 = vpop.permute.xlu0 %94
    %vm96 = vcmp.eq.s32.totalorder %v55, %v92
    %vm97 = vcmp.eq.s32.totalorder %v55, %v95
    %v98 = vsel %vm96, 1.0, 0.0
    %v99 = vsel %vm97, 1.0, 0.0
    %v100 = vpack.c.bf16 %v99, %v98
    %s101 = scalar_lea.vmem [#allocation2], 64
    %v102 = vld [vmem:[%s101] sm:$0xf]
    %v103 = vld [vmem:[%s101 + $0x4] sm:$0xf]
    %v104 = vld [vmem:[%s101 + $0x8] sm:$0xf]
    %v105 = vld [vmem:[%s101 + $0xc] sm:$0xf]
    %v106 = vld [vmem:[%s101 + $0x10] sm:$0xf]
    %v107 = vld [vmem:[%s101 + $0x14] sm:$0xf]
    %v108 = vld [vmem:[%s101 + $0x18] sm:$0xf]
    %v109 = vld [vmem:[%s101 + $0x1c] sm:$0xf]
    %v110 = vld [vmem:[%s101 + $0x20] sm:$0xf]
    %v111 = vld [vmem:[%s101 + $0x24] sm:$0xf]
    %v112 = vld [vmem:[%s101 + $0x28] sm:$0xf]
    %v113 = vld [vmem:[%s101 + $0x2c] sm:$0xf]
    %v114 = vld [vmem:[%s101 + $0x30] sm:$0xf]
    %v115 = vld [vmem:[%s101 + $0x34] sm:$0xf]
    %v116 = vld [vmem:[%s101 + $0x38] sm:$0xf]
    %v117 = vld [vmem:[%s101 + $0x3c] sm:$0xf]
    %v134 = vunpack.c.l.b16 %v102
    %v135 = vunpack.c.l.b16 %v103
    %v136 = vunpack.c.l.b16 %v104
    %v137 = vunpack.c.l.b16 %v105
    %v138 = vunpack.c.l.b16 %v106
    %v139 = vunpack.c.l.b16 %v107
    %v140 = vunpack.c.l.b16 %v108
    %v141 = vunpack.c.l.b16 %v109
    %v142 = vunpack.c.l.b16 %v110
    %v143 = vunpack.c.l.b16 %v111
    %v144 = vunpack.c.l.b16 %v112
    %v145 = vunpack.c.l.b16 %v113
    %v146 = vunpack.c.l.b16 %v114
    %v147 = vunpack.c.l.b16 %v115
    %v148 = vunpack.c.l.b16 %v116
    %v149 = vunpack.c.l.b16 %v117
    %v150 = vpack.c.b16 %v135, %v134
    %v151 = vpack.c.b16 %v137, %v136
    %v152 = vpack.c.b16 %v139, %v138
    %v153 = vpack.c.b16 %v141, %v140
    %v154 = vpack.c.b16 %v143, %v142
    %v155 = vpack.c.b16 %v145, %v144
    %v156 = vpack.c.b16 %v147, %v146
    %v157 = vpack.c.b16 %v149, %v148
    %166 = vmatprep.subr.bf16.mxu0 0
    %167 = vmatpush1.bf16.msra.mxu0 %v157
    %168 = vmatprep.subr.bf16.mxu0 0
    %169 = vmatpush1.bf16.msra.mxu0 %v156
    %170 = vmatprep.subr.bf16.mxu0 0
    %171 = vmatpush1.bf16.msra.mxu0 %v155
    %172 = vmatprep.subr.bf16.mxu0 0
    %173 = vmatpush1.bf16.msra.mxu0 %v154
    %174 = vmatprep.subr.bf16.mxu0 0
    %175 = vmatpush1.bf16.msra.mxu0 %v153
    %176 = vmatprep.subr.bf16.mxu0 0
    %177 = vmatpush1.bf16.msra.mxu0 %v152
    %178 = vmatprep.subr.bf16.mxu0 0
    %179 = vmatpush1.bf16.msra.mxu0 %v151
    %180 = vmatprep.subr.bf16.mxu0 0
    %181 = vmatpush1.bf16.msra.mxu0 %v150
    %182 = vmatprep.subr.bf16.mxu0 0
    %183 = vmatpush2.bf16.msra.mxu0 0
    %184 = vmatprep.subr.bf16.mxu0 0
    %185 = vmatpush2.bf16.msra.mxu0 0
    %186 = vmatprep.subr.bf16.mxu0 0
    %187 = vmatpush2.bf16.msra.mxu0 0
    %188 = vmatprep.subr.bf16.mxu0 0
    %189 = vmatpush2.bf16.msra.mxu0 0
    %190 = vmatprep.subr.bf16.mxu0 0
    %191 = vmatpush2.bf16.msra.mxu0 0
    %192 = vmatprep.subr.bf16.mxu0 0
    %193 = vmatpush2.bf16.msra.mxu0 0
    %194 = vmatprep.subr.bf16.mxu0 0
    %195 = vmatpush2.bf16.msra.mxu0 0
    %196 = vmatprep.subr.bf16.mxu0 0
    %197 = vmatpush2.bf16.msra.mxu0 0
    %198 = vmatprep.mubr.bf16.mxu0 0
    %199 = vmatmul.mubr.bf16.gmra.mxu0 %v100
    %v200 = vpop.f32.mrf.mxu0
    %v201 = vadd.f32 0.0, %v200
    %v202 = vpop.f32.mrf.mxu0
    %v203 = vpop.f32.mrf.mxu0
    %v204 = vadd.f32 0.0, %v203
    %v205 = vpop.f32.mrf.mxu0
    %206 = vdwg.mxu0
    %v223 = vunpack.c.l.b16 %v67
    %v224 = vunpack.c.l.b16 %v68
    %v225 = vunpack.c.l.b16 %v69
    %v226 = vunpack.c.l.b16 %v70
    %v227 = vunpack.c.l.b16 %v71
    %v228 = vunpack.c.l.b16 %v72
    %v229 = vunpack.c.l.b16 %v73
    %v230 = vunpack.c.l.b16 %v74
    %v231 = vunpack.c.l.b16 %v75
    %v232 = vunpack.c.l.b16 %v76
    %v233 = vunpack.c.l.b16 %v77
    %v234 = vunpack.c.l.b16 %v78
    %v235 = vunpack.c.l.b16 %v79
    %v236 = vunpack.c.l.b16 %v80
    %v237 = vunpack.c.l.b16 %v81
    %v238 = vunpack.c.l.b16 %v82
    %v239 = vpack.c.b16 %v224, %v223
    %v240 = vpack.c.b16 %v226, %v225
    %v241 = vpack.c.b16 %v228, %v227
    %v242 = vpack.c.b16 %v230, %v229
    %v243 = vpack.c.b16 %v232, %v231
    %v244 = vpack.c.b16 %v234, %v233
    %v245 = vpack.c.b16 %v236, %v235
    %v246 = vpack.c.b16 %v238, %v237
    %255 = vmatprep.subr.bf16.mxu0 0
    %256 = vmatpush1.bf16.msra.mxu0 %v246
    %257 = vmatprep.subr.bf16.mxu0 0
    %258 = vmatpush1.bf16.msra.mxu0 %v245
    %259 = vmatprep.subr.bf16.mxu0 0
    %260 = vmatpush1.bf16.msra.mxu0 %v244
    %261 = vmatprep.subr.bf16.mxu0 0
    %262 = vmatpush1.bf16.msra.mxu0 %v243
    %263 = vmatprep.subr.bf16.mxu0 0
    %264 = vmatpush1.bf16.msra.mxu0 %v242
    %265 = vmatprep.subr.bf16.mxu0 0
    %266 = vmatpush1.bf16.msra.mxu0 %v241
    %267 = vmatprep.subr.bf16.mxu0 0
    %268 = vmatpush1.bf16.msra.mxu0 %v240
    %269 = vmatprep.subr.bf16.mxu0 0
    %270 = vmatpush1.bf16.msra.mxu0 %v239
    %271 = vmatprep.subr.bf16.mxu0 0
    %272 = vmatpush2.bf16.msra.mxu0 0
    %273 = vmatprep.subr.bf16.mxu0 0
    %274 = vmatpush2.bf16.msra.mxu0 0
    %275 = vmatprep.subr.bf16.mxu0 0
    %276 = vmatpush2.bf16.msra.mxu0 0
    %277 = vmatprep.subr.bf16.mxu0 0
    %278 = vmatpush2.bf16.msra.mxu0 0
    %279 = vmatprep.subr.bf16.mxu0 0
    %280 = vmatpush2.bf16.msra.mxu0 0
    %281 = vmatprep.subr.bf16.mxu0 0
    %282 = vmatpush2.bf16.msra.mxu0 0
    %283 = vmatprep.subr.bf16.mxu0 0
    %284 = vmatpush2.bf16.msra.mxu0 0
    %285 = vmatprep.subr.bf16.mxu0 0
    %286 = vmatpush2.bf16.msra.mxu0 0
    %287 = vmatprep.mubr.bf16.mxu0 0
    %288 = vmatmul.mubr.bf16.gmra.mxu0 %v66
    %v289 = vpop.f32.mrf.mxu0
    %v290 = vadd.f32 %v201, %v289
    %v291 = vpop.f32.mrf.mxu0
    %v292 = vpop.f32.mrf.mxu0
    %v293 = vadd.f32 %v204, %v292
    %v294 = vpop.f32.mrf.mxu0
    %295 = vdwg.mxu0
    %vm296 = vcmask 1045504
    %v297 = vrot.slane %v50, 2
    %v298 = vrot.slane %v51, 2
    %v299 = vsel %vm296, %v297, %v298
    %v300 = vrot.slane %v52, 2
    %v301 = vrot.slane %v53, 2
    %v302 = vsel %vm296, %v300, %v301
    %303 = vset.pattern.permute.xlu0 0
    %304 = vperm.xlu0 %303, %v299
    %v305 = vpop.permute.xlu0 %304
    %306 = vset.pattern.permute.xlu0 0
    %307 = vperm.xlu0 %306, %v302
    %v308 = vpop.permute.xlu0 %307
    %vm309 = vcmp.eq.s32.totalorder %v55, %v305
    %vm310 = vcmp.eq.s32.totalorder %v55, %v308
    %v311 = vsel %vm309, 1.0, 0.0
    %v312 = vsel %vm310, 1.0, 0.0
    %v313 = vpack.c.bf16 %v312, %v311
    %s314 = scalar_lea.vmem [#allocation2], 128
    %v315 = vld [vmem:[%s314] sm:$0xf]
    %v316 = vld [vmem:[%s314 + $0x4] sm:$0xf]
    %v317 = vld [vmem:[%s314 + $0x8] sm:$0xf]
    %v318 = vld [vmem:[%s314 + $0xc] sm:$0xf]
    %v319 = vld [vmem:[%s314 + $0x10] sm:$0xf]
    %v320 = vld [vmem:[%s314 + $0x14] sm:$0xf]
    %v321 = vld [vmem:[%s314 + $0x18] sm:$0xf]
    %v322 = vld [vmem:[%s314 + $0x1c] sm:$0xf]
    %v323 = vld [vmem:[%s314 + $0x20] sm:$0xf]
    %v324 = vld [vmem:[%s314 + $0x24] sm:$0xf]
    %v325 = vld [vmem:[%s314 + $0x28] sm:$0xf]
    %v326 = vld [vmem:[%s314 + $0x2c] sm:$0xf]
    %v327 = vld [vmem:[%s314 + $0x30] sm:$0xf]
    %v328 = vld [vmem:[%s314 + $0x34] sm:$0xf]
    %v329 = vld [vmem:[%s314 + $0x38] sm:$0xf]
    %v330 = vld [vmem:[%s314 + $0x3c] sm:$0xf]
    %v347 = vunpack.c.l.b16 %v315
    %v348 = vunpack.c.l.b16 %v316
    %v349 = vunpack.c.l.b16 %v317
    %v350 = vunpack.c.l.b16 %v318
    %v351 = vunpack.c.l.b16 %v319
    %v352 = vunpack.c.l.b16 %v320
    %v353 = vunpack.c.l.b16 %v321
    %v354 = vunpack.c.l.b16 %v322
    %v355 = vunpack.c.l.b16 %v323
    %v356 = vunpack.c.l.b16 %v324
    %v357 = vunpack.c.l.b16 %v325
    %v358 = vunpack.c.l.b16 %v326
    %v359 = vunpack.c.l.b16 %v327
    %v360 = vunpack.c.l.b16 %v328
    %v361 = vunpack.c.l.b16 %v329
    %v362 = vunpack.c.l.b16 %v330
    %v363 = vpack.c.b16 %v348, %v347
    %v364 = vpack.c.b16 %v350, %v349
    %v365 = vpack.c.b16 %v352, %v351
    %v366 = vpack.c.b16 %v354, %v353
    %v367 = vpack.c.b16 %v356, %v355
    %v368 = vpack.c.b16 %v358, %v357
    %v369 = vpack.c.b16 %v360, %v359
    %v370 = vpack.c.b16 %v362, %v361
    %379 = vmatprep.subr.bf16.mxu0 0
    %380 = vmatpush1.bf16.msra.mxu0 %v370
    %381 = vmatprep.subr.bf16.mxu0 0
    %382 = vmatpush1.bf16.msra.mxu0 %v369
    %383 = vmatprep.subr.bf16.mxu0 0
    %384 = vmatpush1.bf16.msra.mxu0 %v368
    %385 = vmatprep.subr.bf16.mxu0 0
    %386 = vmatpush1.bf16.msra.mxu0 %v367
    %387 = vmatprep.subr.bf16.mxu0 0
    %388 = vmatpush1.bf16.msra.mxu0 %v366
    %389 = vmatprep.subr.bf16.mxu0 0
    %390 = vmatpush1.bf16.msra.mxu0 %v365
    %391 = vmatprep.subr.bf16.mxu0 0
    %392 = vmatpush1.bf16.msra.mxu0 %v364
    %393 = vmatprep.subr.bf16.mxu0 0
    %394 = vmatpush1.bf16.msra.mxu0 %v363
    %395 = vmatprep.subr.bf16.mxu0 0
    %396 = vmatpush2.bf16.msra.mxu0 0
    %397 = vmatprep.subr.bf16.mxu0 0
    %398 = vmatpush2.bf16.msra.mxu0 0
    %399 = vmatprep.subr.bf16.mxu0 0
    %400 = vmatpush2.bf16.msra.mxu0 0
    %401 = vmatprep.subr.bf16.mxu0 0
    %402 = vmatpush2.bf16.msra.mxu0 0
    %403 = vmatprep.subr.bf16.mxu0 0
    %404 = vmatpush2.bf16.msra.mxu0 0
    %405 = vmatprep.subr.bf16.mxu0 0
    %406 = vmatpush2.bf16.msra.mxu0 0
    %407 = vmatprep.subr.bf16.mxu0 0
    %408 = vmatpush2.bf16.msra.mxu0 0
    %409 = vmatprep.subr.bf16.mxu0 0
    %410 = vmatpush2.bf16.msra.mxu0 0
    %411 = vmatprep.mubr.bf16.mxu0 0
    %412 = vmatmul.mubr.bf16.gmra.mxu0 %v313
    %v413 = vpop.f32.mrf.mxu0
    %v414 = vadd.f32 0.0, %v413
    %v415 = vpop.f32.mrf.mxu0
    %v416 = vpop.f32.mrf.mxu0
    %v417 = vadd.f32 0.0, %v416
    %v418 = vpop.f32.mrf.mxu0
    %419 = vdwg.mxu0
    %v420 = vadd.f32 %v290, %v414
    %v421 = vadd.f32 %v293, %v417
    %v422 = vld [vmem:[%s2] sm:$0x1]
    %v424 = vlaneseq
    %v425 = vshrl.u32 %v424, 7
    %v426 = vsub.s32 0, %v425
    %v427 = vrot.slane %v422, %v426
    %v429 = vadd.f32 %v420, %v427
    %v430 = vadd.f32 %v421, %v427
    %v431 = vmax.f32 %v429, 0.0
    %v432 = vmax.f32 %v430, 0.0
    %v433 = vrot.slane %v431, 4
    %v434 = vmax.f32 %v431, %v433
    %v435 = vrot.slane %v434, 2
    %v436 = vmax.f32 %v434, %v435
    %v437 = vrot.slane %v436, 1
    %v438 = vmax.f32 %v436, %v437
    %v439 = vrot.slane %v432, 4
    %v440 = vmax.f32 %v432, %v439
    %v441 = vrot.slane %v440, 2
    %v442 = vmax.f32 %v440, %v441
    %v443 = vrot.slane %v442, 1
    %v444 = vmax.f32 %v442, %v443
    %v445 = vpack.c.bf16 %v438, %v438
    %v446 = vpack.c.bf16 %v444, %v444
    %v447 = vld [vmem:[#allocation5] sm:$0xf]
    %v448 = vld [vmem:[#allocation5 + $0x4] sm:$0xf]
    %v449 = vld [vmem:[#allocation5 + $0x8] sm:$0xf]
    %v450 = vld [vmem:[#allocation5 + $0xc] sm:$0xf]
    %v451 = vld [vmem:[#allocation5 + $0x10] sm:$0xf]
    %v452 = vld [vmem:[#allocation5 + $0x14] sm:$0xf]
    %v453 = vld [vmem:[#allocation5 + $0x18] sm:$0xf]
    %v454 = vld [vmem:[#allocation5 + $0x1c] sm:$0xf]
    %v455 = vld [vmem:[#allocation5 + $0x20] sm:$0xf]
    %v456 = vld [vmem:[#allocation5 + $0x24] sm:$0xf]
    %v457 = vld [vmem:[#allocation5 + $0x28] sm:$0xf]
    %v458 = vld [vmem:[#allocation5 + $0x2c] sm:$0xf]
    %v459 = vld [vmem:[#allocation5 + $0x30] sm:$0xf]
    %v460 = vld [vmem:[#allocation5 + $0x34] sm:$0xf]
    %v461 = vld [vmem:[#allocation5 + $0x38] sm:$0xf]
    %v462 = vld [vmem:[#allocation5 + $0x3c] sm:$0xf]
    %v463 = vld [vmem:[%s4] sm:$0x1]
    %v465 = vlaneseq
    %v466 = vshrl.u32 %v465, 7
    %v467 = vsub.s32 0, %v466
    %v468 = vrot.slane %v463, %v467
    %v472 = vunpack.c.l.b16 %v445
    %v473 = vunpack.c.l.b16 %v446
    %vm474 = vcmask 1041409
    %v475 = vsel %vm474, %v473, %v472
    %v476 = vpack.c.b16 %v475, %v475
    %v494 = vunpack.c.l.b16 %v447
    %v495 = vunpack.c.l.b16 %v448
    %v496 = vunpack.c.l.b16 %v449
    %v497 = vunpack.c.l.b16 %v450
    %v498 = vunpack.c.l.b16 %v451
    %v499 = vunpack.c.l.b16 %v452
    %v500 = vunpack.c.l.b16 %v453
    %v501 = vunpack.c.l.b16 %v454
    %v502 = vunpack.c.l.b16 %v455
    %v503 = vunpack.c.l.b16 %v456
    %v504 = vunpack.c.l.b16 %v457
    %v505 = vunpack.c.l.b16 %v458
    %v506 = vunpack.c.l.b16 %v459
    %v507 = vunpack.c.l.b16 %v460
    %v508 = vunpack.c.l.b16 %v461
    %v509 = vunpack.c.l.b16 %v462
    %v510 = vpack.c.b16 %v495, %v494
    %v511 = vpack.c.b16 %v497, %v496
    %v512 = vpack.c.b16 %v499, %v498
    %v513 = vpack.c.b16 %v501, %v500
    %v514 = vpack.c.b16 %v503, %v502
    %v515 = vpack.c.b16 %v505, %v504
    %v516 = vpack.c.b16 %v507, %v506
    %v517 = vpack.c.b16 %v509, %v508
    %526 = vmatprep.subr.bf16.mxu0 0
    %527 = vmatpush1.bf16.msra.mxu0 %v517
    %528 = vmatprep.subr.bf16.mxu0 0
    %529 = vmatpush1.bf16.msra.mxu0 %v516
    %530 = vmatprep.subr.bf16.mxu0 0
    %531 = vmatpush1.bf16.msra.mxu0 %v515
    %532 = vmatprep.subr.bf16.mxu0 0
    %533 = vmatpush1.bf16.msra.mxu0 %v514
    %534 = vmatprep.subr.bf16.mxu0 0
    %535 = vmatpush1.bf16.msra.mxu0 %v513
    %536 = vmatprep.subr.bf16.mxu0 0
    %537 = vmatpush1.bf16.msra.mxu0 %v512
    %538 = vmatprep.subr.bf16.mxu0 0
    %539 = vmatpush1.bf16.msra.mxu0 %v511
    %540 = vmatprep.subr.bf16.mxu0 0
    %541 = vmatpush1.bf16.msra.mxu0 %v510
    %542 = vmatprep.subr.bf16.mxu0 0
    %543 = vmatpush2.bf16.msra.mxu0 0
    %544 = vmatprep.subr.bf16.mxu0 0
    %545 = vmatpush2.bf16.msra.mxu0 0
    %546 = vmatprep.subr.bf16.mxu0 0
    %547 = vmatpush2.bf16.msra.mxu0 0
    %548 = vmatprep.subr.bf16.mxu0 0
    %549 = vmatpush2.bf16.msra.mxu0 0
    %550 = vmatprep.subr.bf16.mxu0 0
    %551 = vmatpush2.bf16.msra.mxu0 0
    %552 = vmatprep.subr.bf16.mxu0 0
    %553 = vmatpush2.bf16.msra.mxu0 0
    %554 = vmatprep.subr.bf16.mxu0 0
    %555 = vmatpush2.bf16.msra.mxu0 0
    %556 = vmatprep.subr.bf16.mxu0 0
    %557 = vmatpush2.bf16.msra.mxu0 0
    %558 = vmatprep.mubr.bf16.mxu0 0
    %559 = vmatmul.mubr.bf16.gmra.mxu0 %v476
    %v560 = vpop.f32.mrf.mxu0
    %v561 = vadd.f32 %v468, %v560
    %v562 = vpop.f32.mrf.mxu0
    %v563 = vpop.f32.mrf.mxu0
    %v564 = vpop.f32.mrf.mxu0
    %565 = vdwg.mxu0
    %566 = vst [vmem:[#allocation7] sm:$0x3] %v561
    // Predicated region
    $region30: #{tpu_custom_call.1} parent=1 // pred_check
      _
    $region31: #{tpu_custom_call.1} parent=1 // pred_check_branch
      %568 = sbr.rel (0) target = $region33
    $region32: #{tpu_custom_call.1} parent=1 // pred_region
      %s570 = ssub.s32 32, 32
      %571 = vsyncadd [#allocation4], %s570
      %s573 = sshll.u32 [#allocation7], 4
      %s574 = int_to_ptr.vmem [resolvable:$true] %s573
      %576 = dma.vmem_to_hbm [thread:$0]  %s574, 32, %s5, [#allocation4]
    $region33: #{tpu_custom_call.1} parent=1 // pred_fallthru
      _
    // Predicated region
    $region34: #{tpu_custom_call.1} parent=1 // pred_check
      _
    $region35: #{tpu_custom_call.1} parent=1 // pred_check_branch
      %578 = sbr.rel (0) target = $region37
    $region36: #{tpu_custom_call.1} parent=1 // pred_region
      %579 = dma.done [#allocation4], 32
    $region37: #{tpu_custom_call.1} parent=1 // pred_fallthru
      _
    %580 = vsyncpa [#allocation3], 1
    %581 = vsyncpa [#allocation6], 1
    %582 = vsyncpa [#allocation4], 1

</llo_original>
